<compile_context>
chip_gen: v7x
topology: tpu7x:2x2x1
jax: 0.10.0
libtpu: 0.0.40
codegen_flags: <defaults>
</compile_context>

<pallas_src>
import functools

import jax
import jax.numpy as jnp
from jax.experimental import pallas as pl
from jax.experimental.pallas import tpu as pltpu


# --------------------------------------------------------------------------
# Parameter slab layout
# --------------------------------------------------------------------------
def _round_up(n, m=8):
    return ((n + m - 1) // m) * m


def _slab_layout(state_size, hidden_size, action_size):
    """Row layout of the packed parameter slab.

    Each layer occupies a sublane-aligned row block:
      rows [off, off+fan_in)      -> weight (fan_in, fan_out)
      row  [off+fan_in]           -> bias   (fan_out,)
    Columns 0..fan_out hold data, the rest are zero padding.
    """
    dims = (
        (state_size, hidden_size),
        (hidden_size, hidden_size),
        (hidden_size, hidden_size),
        (hidden_size, action_size),
    )
    offsets = []
    off = 0
    for fan_in, _ in dims:
        offsets.append(off)
        off += _round_up(fan_in + 1)          # weight rows + bias row, 8-aligned
    total_rows = off
    cols = max(hidden_size, action_size)
    return dims, tuple(offsets), total_rows, cols


def pack_params(params, state_size, hidden_size, action_size):
    """Pack (w1,b1,...,w4,b4) into one contiguous f32 slab (built once)."""
    dims, offsets, total_rows, cols = _slab_layout(state_size, hidden_size,
                                                   action_size)
    slab = jnp.zeros((total_rows, cols), jnp.float32)
    ws_bs = [(params[2 * i], params[2 * i + 1]) for i in range(4)]
    for (fan_in, fan_out), off, (w, b) in zip(dims, offsets, ws_bs):
        slab = slab.at[off:off + fan_in, :fan_out].set(w)
        slab = slab.at[off + fan_in, :fan_out].set(b.reshape(-1))
    return slab


# --------------------------------------------------------------------------
# Kernel
# --------------------------------------------------------------------------
def _policy_kernel(x_ref, p_ref, out_ref, *, dims, offsets):
    """MLP + softmax. All operands VMEM-resident; params carved from one slab."""
    h = x_ref[...]
    n_layers = len(dims)
    for li, ((fan_in, fan_out), off) in enumerate(zip(dims, offsets)):
        w = p_ref[off:off + fan_in, 0:fan_out]                  # (in, out)
        b = p_ref[off + fan_in:off + fan_in + 1, 0:fan_out]     # (1, out)
        h = jnp.dot(h, w, preferred_element_type=jnp.float32) + b
        if li < n_layers - 1:
            h = jnp.maximum(h, 0.0)

    # softmax over dim=1 (numerically stable); reciprocal goes to the EUP slot.
    m = jnp.max(h, axis=1, keepdims=True)
    e = jnp.exp(h - m)
    denom = jnp.sum(e, axis=1, keepdims=True)
    out_ref[...] = (e * pl.reciprocal(denom, approx=True)).astype(out_ref.dtype)


# --------------------------------------------------------------------------
# Wrapper
# --------------------------------------------------------------------------
def policy_forward(x, slab, *, state_size, hidden_size, action_size,
                   batch_tile=256):
    """Forward pass. Small batches: single gridless call (whole arrays in VMEM).
    Large batches: tile the batch axis, weights replicated (stay VMEM-resident
    across grid steps), grid marked 'parallel' for v7x megacore."""
    dims, offsets, total_rows, cols = _slab_layout(state_size, hidden_size,
                                                   action_size)
    assert slab.shape == (total_rows, cols)
    batch = x.shape[0]
    kernel = functools.partial(_policy_kernel, dims=dims, offsets=offsets)

    if batch <= batch_tile:
        # No grid at all: no pipeline prologue/epilogue, 2 DMAs total.
        return pl.pallas_call(
            kernel,
            out_shape=jax.ShapeDtypeStruct((batch, action_size), jnp.float32),
        )(x, slab)

    # Batch-tiled path.
    n_tiles = (batch + batch_tile - 1) // batch_tile
    padded = n_tiles * batch_tile
    if padded != batch:
        x = jnp.pad(x, ((0, padded - batch), (0, 0)))

    out = pl.pallas_call(
        kernel,
        out_shape=jax.ShapeDtypeStruct((padded, action_size), jnp.float32),
        grid=(n_tiles,),
        in_specs=[
            pl.BlockSpec((batch_tile, state_size), lambda i: (i, 0)),
            pl.BlockSpec(slab.shape, lambda i: (0, 0)),   # weights stay resident
        ],
        out_specs=pl.BlockSpec((batch_tile, action_size), lambda i: (i, 0)),
        compiler_params=pltpu.CompilerParams(
            dimension_semantics=("parallel",)),
    )(x, slab)
    return out[:batch]


# --------------------------------------------------------------------------
# Init / reference
# --------------------------------------------------------------------------
def init_params(key, state_size, hidden_size, action_size):
    """PyTorch nn.Linear-style init: U(-1/sqrt(fan_in), 1/sqrt(fan_in)).
    Weights stored as (in, out); biases as (1, out)."""
    dims = [(state_size, hidden_size),
            (hidden_size, hidden_size),
            (hidden_size, hidden_size),
            (hidden_size, action_size)]
    params = []
    for fan_in, fan_out in dims:
        key, kw, kb = jax.random.split(key, 3)
        bound = 1.0 / jnp.sqrt(jnp.float32(fan_in))
        w = jax.random.uniform(kw, (fan_in, fan_out), jnp.float32, -bound, bound)
        b = jax.random.uniform(kb, (1, fan_out), jnp.float32, -bound, bound)
        params.extend([w, b])
    return tuple(params)


def _reference_forward(x, params):
    w1, b1, w2, b2, w3, b3, w4, b4 = params
    h = jnp.maximum(x @ w1 + b1, 0.0)
    h = jnp.maximum(h @ w2 + b2, 0.0)
    h = jnp.maximum(h @ w3 + b3, 0.0)
    logits = h @ w4 + b4
    return jax.nn.softmax(logits, axis=1)


# --------------------------------------------------------------------------
# Main
# --------------------------------------------------------------------------
if __name__ == "__main__":
    batch = 8
    state_size = 8
    hidden_size = 16   # fixed by the module
    action_size = 4

    key = jax.random.PRNGKey(0)
    key, kx = jax.random.split(key)
    x = jax.random.normal(kx, (batch, state_size), jnp.float32)
    params = init_params(key, state_size, hidden_size, action_size)
    slab = pack_params(params, state_size, hidden_size, action_size)

    # Small-batch path (gridless, 2 DMAs).
    out = policy_forward(x, slab, state_size=state_size,
                         hidden_size=hidden_size, action_size=action_size)
    out = jax.block_until_ready(out)
    ref = _reference_forward(x, params)
    assert out.shape == (batch, action_size)
    # approx reciprocal in the softmax -> slightly looser tolerance than 1e-5
    assert jnp.allclose(out, ref, atol=5e-3, rtol=5e-3), "mismatch vs reference"
    assert jnp.allclose(jnp.sum(out, axis=1), jnp.ones((batch,)), atol=5e-3)

    # Larger batch exercises the batch-tiled, megacore-parallel path.
    key, kb = jax.random.split(key)
    big = 512
    xb = jax.random.normal(kb, (big, state_size), jnp.float32)
    outb = policy_forward(xb, slab, state_size=state_size,
                          hidden_size=hidden_size, action_size=action_size)
    outb = jax.block_until_ready(outb)
    refb = _reference_forward(xb, params)
    assert outb.shape == (big, action_size)
    assert jnp.allclose(outb, refb, atol=5e-3, rtol=5e-3), "tiled path mismatch"

    print("KERNEL_OK")
</pallas_src>

<mosaic_0001>
module attributes {stable_mosaic.version = 11 : i64} {
  func.func @_policy_kernel(%arg0: memref<8x8xf32, #tpu.memory_space<vmem>>, %arg1: memref<88x16xf32, #tpu.memory_space<vmem>>, %arg2: memref<8x4xf32, #tpu.memory_space<vmem>>) attributes {dimension_semantics = [], scalar_prefetch = 0 : i64, scratch_operands = 0 : i64, tpu.core_type = #tpu.core_type<tc>} {
    %c0 = arith.constant 0 : index
    %c0_0 = arith.constant 0 : index
    %0 = vector.load %arg0[%c0, %c0_0] : memref<8x8xf32, #tpu.memory_space<vmem>>, vector<8x8xf32>
    %c0_1 = arith.constant 0 : index
    %c0_2 = arith.constant 0 : index
    %1 = vector.load %arg1[%c0_1, %c0_2] : memref<88x16xf32, #tpu.memory_space<vmem>>, vector<8x16xf32>
    %c8 = arith.constant 8 : index
    %c0_3 = arith.constant 0 : index
    %2 = vector.load %arg1[%c8, %c0_3] : memref<88x16xf32, #tpu.memory_space<vmem>>, vector<1x16xf32>
    %cst = arith.constant dense<0.000000e+00> : vector<8x16xf32>
    %3 = tpu.matmul %0, %1, %cst {dimension_numbers = #tpu.dot_dimension_numbers<[1], [0], [0], [1], [0, 0, 1, 1], [], []>} : vector<8x8xf32>, vector<8x16xf32>, vector<8x16xf32> -> vector<8x16xf32>
    %4 = vector.broadcast %2 : vector<1x16xf32> to vector<8x16xf32>
    %5 = arith.addf %3, %4 : vector<8x16xf32>
    %cst_4 = arith.constant 0.000000e+00 : f32
    %6 = vector.broadcast %cst_4 : f32 to vector<8x16xf32>
    %7 = arith.maximumf %5, %6 : vector<8x16xf32>
    %c16 = arith.constant 16 : index
    %c0_5 = arith.constant 0 : index
    %8 = vector.load %arg1[%c16, %c0_5] : memref<88x16xf32, #tpu.memory_space<vmem>>, vector<16x16xf32>
    %c32 = arith.constant 32 : index
    %c0_6 = arith.constant 0 : index
    %9 = vector.load %arg1[%c32, %c0_6] : memref<88x16xf32, #tpu.memory_space<vmem>>, vector<1x16xf32>
    %cst_7 = arith.constant dense<0.000000e+00> : vector<8x16xf32>
    %10 = tpu.matmul %7, %8, %cst_7 {dimension_numbers = #tpu.dot_dimension_numbers<[1], [0], [0], [1], [0, 0, 1, 1], [], []>} : vector<8x16xf32>, vector<16x16xf32>, vector<8x16xf32> -> vector<8x16xf32>
    %11 = vector.broadcast %9 : vector<1x16xf32> to vector<8x16xf32>
    %12 = arith.addf %10, %11 : vector<8x16xf32>
    %cst_8 = arith.constant 0.000000e+00 : f32
    %13 = vector.broadcast %cst_8 : f32 to vector<8x16xf32>
    %14 = arith.maximumf %12, %13 : vector<8x16xf32>
    %c40 = arith.constant 40 : index
    %c0_9 = arith.constant 0 : index
    %15 = vector.load %arg1[%c40, %c0_9] : memref<88x16xf32, #tpu.memory_space<vmem>>, vector<16x16xf32>
    %c56 = arith.constant 56 : index
    %c0_10 = arith.constant 0 : index
    %16 = vector.load %arg1[%c56, %c0_10] : memref<88x16xf32, #tpu.memory_space<vmem>>, vector<1x16xf32>
    %cst_11 = arith.constant dense<0.000000e+00> : vector<8x16xf32>
    %17 = tpu.matmul %14, %15, %cst_11 {dimension_numbers = #tpu.dot_dimension_numbers<[1], [0], [0], [1], [0, 0, 1, 1], [], []>} : vector<8x16xf32>, vector<16x16xf32>, vector<8x16xf32> -> vector<8x16xf32>
    %18 = vector.broadcast %16 : vector<1x16xf32> to vector<8x16xf32>
    %19 = arith.addf %17, %18 : vector<8x16xf32>
    %cst_12 = arith.constant 0.000000e+00 : f32
    %20 = vector.broadcast %cst_12 : f32 to vector<8x16xf32>
    %21 = arith.maximumf %19, %20 : vector<8x16xf32>
    %c64 = arith.constant 64 : index
    %c0_13 = arith.constant 0 : index
    %22 = vector.load %arg1[%c64, %c0_13] : memref<88x16xf32, #tpu.memory_space<vmem>>, vector<16x4xf32>
    %c80 = arith.constant 80 : index
    %c0_14 = arith.constant 0 : index
    %23 = vector.load %arg1[%c80, %c0_14] : memref<88x16xf32, #tpu.memory_space<vmem>>, vector<1x4xf32>
    %cst_15 = arith.constant dense<0.000000e+00> : vector<8x4xf32>
    %24 = tpu.matmul %21, %22, %cst_15 {dimension_numbers = #tpu.dot_dimension_numbers<[1], [0], [0], [1], [0, 0, 1, 1], [], []>} : vector<8x16xf32>, vector<16x4xf32>, vector<8x4xf32> -> vector<8x4xf32>
    %25 = vector.broadcast %23 : vector<1x4xf32> to vector<8x4xf32>
    %26 = arith.addf %24, %25 : vector<8x4xf32>
    %cst_16 = arith.constant dense<0xFF800000> : vector<8xf32>
    %27 = vector.multi_reduction <maximumf>, %26, %cst_16 [1] : vector<8x4xf32> to vector<8xf32>
    %28 = vector.shape_cast %27 : vector<8xf32> to vector<8x1xf32>
    %29 = vector.broadcast %28 : vector<8x1xf32> to vector<8x4xf32>
    %30 = arith.subf %26, %29 : vector<8x4xf32>
    %31 = math.exp %30 : vector<8x4xf32>
    %cst_17 = arith.constant dense<0.000000e+00> : vector<8xf32>
    %32 = vector.multi_reduction <add>, %31, %cst_17 [1] : vector<8x4xf32> to vector<8xf32>
    %33 = vector.shape_cast %32 : vector<8xf32> to vector<8x1xf32>
    %34 = tpu.reciprocal %33 {approx = true} : vector<8x1xf32> -> vector<8x1xf32>
    %35 = vector.broadcast %34 : vector<8x1xf32> to vector<8x4xf32>
    %36 = arith.mulf %31, %35 : vector<8x4xf32>
    %c0_18 = arith.constant 0 : index
    %c0_19 = arith.constant 0 : index
    %37 = vector.load %arg2[%c0_18, %c0_19] : memref<8x4xf32, #tpu.memory_space<vmem>>, vector<8x4xf32>
    tpu.vector_store %arg2[%c0_18, %c0_19], %36 {strides = array<i32>} : memref<8x4xf32, #tpu.memory_space<vmem>>, vector<8x4xf32>,
    return
  }
}

</mosaic_0001>

<llo_original>
// kernel: tpu_custom_call.1
$region0: #{tpu_custom_call.1}
  #allocation0 [shape = 'u32[]', space=smem, size = 0x4, offset = 0x4, fixed_abs, tag = 'smem constant byte address 0x4 - core index']
  #allocation1 [shape = 'u32[144,128]{1,0:T(1,128)}', space=vmem, size = 0x12000, scoped, tag = 'internal scratch']
  %s0 = inlined_call_operand.vmem [shape: f32[8,8], index: 0, kind: input, shape index: {}]
  %s1 = inlined_call_operand.vmem [shape: f32[88,16], index: 1, kind: input, shape index: {}]
  %s2 = inlined_call_operand.vmem [shape: f32[8,4], index: 2, kind: output, shape index: {}]
  %s3 = sld [smem:[#allocation0]]
  $region18: #{tpu_custom_call.1} parent=0
    _
  %s5 = ssub.s32 1, %s3
  %s6 = scalar_select 0, %s5, %s3
  // Predicated region
  $region2: #{tpu_custom_call.1} parent=0 // pred_check
    _
  $region3: #{tpu_custom_call.1} parent=0 // pred_check_branch
    %8 = sbr.rel (0) target = $region5
  $region4: #{tpu_custom_call.1} parent=0 // pred_region
    _
  $region5: #{tpu_custom_call.1} parent=0 // pred_fallthru
    _
  // Predicated region
  $region6: #{tpu_custom_call.1} parent=0 // pred_check
    _
  $region7: #{tpu_custom_call.1} parent=0 // pred_check_branch
    %10 = sbr.rel (0) target = $region9
  $region8: #{tpu_custom_call.1} parent=0 // pred_region
    _
  $region9: #{tpu_custom_call.1} parent=0 // pred_fallthru
    _
  %v11 = vld [vmem:[%s0] sm:$0xff]
  %v12 = vld [vmem:[%s1] sm:$0xff]
  %v13 = vld [vmem:[%s1 + $0x8] sm:$0x1]
  %v14 = vlaneseq
  %v15 = vshrl.u32 %v14, 7
  %v16 = vsub.s32 0, %v15
  %v17 = vrot.slane %v13, %v16
  %vm18 = vcmask 64512
  %v20 = vsel %vm18, %v11, 0
  %22 = vmatprep.subr.mxu0 0.0
  %23 = vmatpush1.msra.mxu0 %v12
  %24 = vmatprep.subr.mxu0 0.0
  %25 = vmatpush1.msra.mxu0 0.0
  %26 = vmatprep.subr.mxu0 0.0
  %27 = vmatpush1.msra.mxu0 0.0
  %28 = vmatprep.subr.mxu0 0.0
  %29 = vmatpush1.msra.mxu0 0.0
  %30 = vmatprep.subr.mxu0 0.0
  %31 = vmatpush1.msra.mxu0 0.0
  %32 = vmatprep.subr.mxu0 0.0
  %33 = vmatpush1.msra.mxu0 0.0
  %34 = vmatprep.subr.mxu0 0.0
  %35 = vmatpush1.msra.mxu0 0.0
  %36 = vmatprep.subr.mxu0 0.0
  %37 = vmatpush1.msra.mxu0 0.0
  %38 = vmatprep.subr.mxu0 0.0
  %39 = vmatpush1.msra.mxu0 0.0
  %40 = vmatprep.subr.mxu0 0.0
  %41 = vmatpush1.msra.mxu0 0.0
  %42 = vmatprep.subr.mxu0 0.0
  %43 = vmatpush1.msra.mxu0 0.0
  %44 = vmatprep.subr.mxu0 0.0
  %45 = vmatpush1.msra.mxu0 0.0
  %46 = vmatprep.subr.mxu0 0.0
  %47 = vmatpush1.msra.mxu0 0.0
  %48 = vmatprep.subr.mxu0 0.0
  %49 = vmatpush1.msra.mxu0 0.0
  %50 = vmatprep.subr.mxu0 0.0
  %51 = vmatpush1.msra.mxu0 0.0
  %52 = vmatprep.subr.mxu0 0.0
  %53 = vmatpush1.msra.mxu0 0.0
  %54 = vmatprep.subr.mxu0 0.0
  %55 = vmatpush1.msra.mxu0 0.0
  %56 = vmatprep.subr.mxu0 0.0
  %57 = vmatpush1.msra.mxu0 0.0
  %58 = vmatprep.subr.mxu0 0.0
  %59 = vmatpush1.msra.mxu0 0.0
  %60 = vmatprep.subr.mxu0 0.0
  %61 = vmatpush1.msra.mxu0 0.0
  %62 = vmatprep.subr.mxu0 0.0
  %63 = vmatpush1.msra.mxu0 0.0
  %64 = vmatprep.subr.mxu0 0.0
  %65 = vmatpush1.msra.mxu0 0.0
  %66 = vmatprep.subr.mxu0 0.0
  %67 = vmatpush1.msra.mxu0 0.0
  %68 = vmatprep.subr.mxu0 0.0
  %69 = vmatpush1.msra.mxu0 0.0
  %70 = vmatprep.subr.mxu0 0.0
  %71 = vmatpush1.msra.mxu0 0.0
  %72 = vmatprep.subr.mxu0 0.0
  %73 = vmatpush1.msra.mxu0 0.0
  %74 = vmatprep.subr.mxu0 0.0
  %75 = vmatpush1.msra.mxu0 0.0
  %76 = vmatprep.subr.mxu0 0.0
  %77 = vmatpush1.msra.mxu0 0.0
  %78 = vmatprep.subr.mxu0 0.0
  %79 = vmatpush1.msra.mxu0 0.0
  %80 = vmatprep.subr.mxu0 0.0
  %81 = vmatpush1.msra.mxu0 0.0
  %82 = vmatprep.subr.mxu0 0.0
  %83 = vmatpush1.msra.mxu0 0.0
  %84 = vmatprep.subr.mxu0 0.0
  %85 = vmatpush1.msra.mxu0 0.0
  %86 = vmatprep.mubr.f32.mxu0 0.0
  %87 = vmatmul.mubr.f32.gmra.mrb[0].mxu0 %v20
  %v88 = vpop.f32.mrb[0].mxu0
  %v89 = vadd.f32 %v17, %v88
  %v90 = vpop.f32.mrb[0].mxu0
  %91 = vdwg.mxu0
  %v92 = vmax.f32 %v89, 0.0
  %v93 = vld [vmem:[%s1 + $0x10] sm:$0xff]
  %v94 = vld [vmem:[%s1 + $0x18] sm:$0xff]
  %v95 = vld [vmem:[%s1 + $0x20] sm:$0x1]
  %v96 = vlaneseq
  %v97 = vshrl.u32 %v96, 7
  %v98 = vsub.s32 0, %v97
  %v99 = vrot.slane %v95, %v98
  %vm100 = vcmask 130048
  %v102 = vsel %vm100, %v92, 0
  %104 = vmatprep.subr.mxu0 0.0
  %105 = vmatpush1.msra.mxu0 %v93
  %106 = vmatprep.subr.mxu0 0.0
  %107 = vmatpush1.msra.mxu0 %v94
  %108 = vmatprep.subr.mxu0 0.0
  %109 = vmatpush1.msra.mxu0 0.0
  %110 = vmatprep.subr.mxu0 0.0
  %111 = vmatpush1.msra.mxu0 0.0
  %112 = vmatprep.subr.mxu0 0.0
  %113 = vmatpush1.msra.mxu0 0.0
  %114 = vmatprep.subr.mxu0 0.0
  %115 = vmatpush1.msra.mxu0 0.0
  %116 = vmatprep.subr.mxu0 0.0
  %117 = vmatpush1.msra.mxu0 0.0
  %118 = vmatprep.subr.mxu0 0.0
  %119 = vmatpush1.msra.mxu0 0.0
  %120 = vmatprep.subr.mxu0 0.0
  %121 = vmatpush1.msra.mxu0 0.0
  %122 = vmatprep.subr.mxu0 0.0
  %123 = vmatpush1.msra.mxu0 0.0
  %124 = vmatprep.subr.mxu0 0.0
  %125 = vmatpush1.msra.mxu0 0.0
  %126 = vmatprep.subr.mxu0 0.0
  %127 = vmatpush1.msra.mxu0 0.0
  %128 = vmatprep.subr.mxu0 0.0
  %129 = vmatpush1.msra.mxu0 0.0
  %130 = vmatprep.subr.mxu0 0.0
  %131 = vmatpush1.msra.mxu0 0.0
  %132 = vmatprep.subr.mxu0 0.0
  %133 = vmatpush1.msra.mxu0 0.0
  %134 = vmatprep.subr.mxu0 0.0
  %135 = vmatpush1.msra.mxu0 0.0
  %136 = vmatprep.subr.mxu0 0.0
  %137 = vmatpush1.msra.mxu0 0.0
  %138 = vmatprep.subr.mxu0 0.0
  %139 = vmatpush1.msra.mxu0 0.0
  %140 = vmatprep.subr.mxu0 0.0
  %141 = vmatpush1.msra.mxu0 0.0
  %142 = vmatprep.subr.mxu0 0.0
  %143 = vmatpush1.msra.mxu0 0.0
  %144 = vmatprep.subr.mxu0 0.0
  %145 = vmatpush1.msra.mxu0 0.0
  %146 = vmatprep.subr.mxu0 0.0
  %147 = vmatpush1.msra.mxu0 0.0
  %148 = vmatprep.subr.mxu0 0.0
  %149 = vmatpush1.msra.mxu0 0.0
  %150 = vmatprep.subr.mxu0 0.0
  %151 = vmatpush1.msra.mxu0 0.0
  %152 = vmatprep.subr.mxu0 0.0
  %153 = vmatpush1.msra.mxu0 0.0
  %154 = vmatprep.subr.mxu0 0.0
  %155 = vmatpush1.msra.mxu0 0.0
  %156 = vmatprep.subr.mxu0 0.0
  %157 = vmatpush1.msra.mxu0 0.0
  %158 = vmatprep.subr.mxu0 0.0
  %159 = vmatpush1.msra.mxu0 0.0
  %160 = vmatprep.subr.mxu0 0.0
  %161 = vmatpush1.msra.mxu0 0.0
  %162 = vmatprep.subr.mxu0 0.0
  %163 = vmatpush1.msra.mxu0 0.0
  %164 = vmatprep.subr.mxu0 0.0
  %165 = vmatpush1.msra.mxu0 0.0
  %166 = vmatprep.subr.mxu0 0.0
  %167 = vmatpush1.msra.mxu0 0.0
  %168 = vmatprep.mubr.f32.mxu0 0.0
  %169 = vmatmul.mubr.f32.gmra.mrb[0].mxu0 %v102
  %v170 = vpop.f32.mrb[0].mxu0
  %v171 = vadd.f32 %v99, %v170
  %v172 = vpop.f32.mrb[0].mxu0
  %173 = vdwg.mxu0
  %v174 = vmax.f32 %v171, 0.0
  %v175 = vld [vmem:[%s1 + $0x28] sm:$0xff]
  %v176 = vld [vmem:[%s1 + $0x30] sm:$0xff]
  %v177 = vld [vmem:[%s1 + $0x38] sm:$0x1]
  %v178 = vlaneseq
  %v179 = vshrl.u32 %v178, 7
  %v180 = vsub.s32 0, %v179
  %v181 = vrot.slane %v177, %v180
  %v183 = vsel %vm100, %v174, 0
  %185 = vmatprep.subr.mxu0 0.0
  %186 = vmatpush1.msra.mxu0 %v175
  %187 = vmatprep.subr.mxu0 0.0
  %188 = vmatpush1.msra.mxu0 %v176
  %189 = vmatprep.subr.mxu0 0.0
  %190 = vmatpush1.msra.mxu0 0.0
  %191 = vmatprep.subr.mxu0 0.0
  %192 = vmatpush1.msra.mxu0 0.0
  %193 = vmatprep.subr.mxu0 0.0
  %194 = vmatpush1.msra.mxu0 0.0
  %195 = vmatprep.subr.mxu0 0.0
  %196 = vmatpush1.msra.mxu0 0.0
  %197 = vmatprep.subr.mxu0 0.0
  %198 = vmatpush1.msra.mxu0 0.0
  %199 = vmatprep.subr.mxu0 0.0
  %200 = vmatpush1.msra.mxu0 0.0
  %201 = vmatprep.subr.mxu0 0.0
  %202 = vmatpush1.msra.mxu0 0.0
  %203 = vmatprep.subr.mxu0 0.0
  %204 = vmatpush1.msra.mxu0 0.0
  %205 = vmatprep.subr.mxu0 0.0
  %206 = vmatpush1.msra.mxu0 0.0
  %207 = vmatprep.subr.mxu0 0.0
  %208 = vmatpush1.msra.mxu0 0.0
  %209 = vmatprep.subr.mxu0 0.0
  %210 = vmatpush1.msra.mxu0 0.0
  %211 = vmatprep.subr.mxu0 0.0
  %212 = vmatpush1.msra.mxu0 0.0
  %213 = vmatprep.subr.mxu0 0.0
  %214 = vmatpush1.msra.mxu0 0.0
  %215 = vmatprep.subr.mxu0 0.0
  %216 = vmatpush1.msra.mxu0 0.0
  %217 = vmatprep.subr.mxu0 0.0
  %218 = vmatpush1.msra.mxu0 0.0
  %219 = vmatprep.subr.mxu0 0.0
  %220 = vmatpush1.msra.mxu0 0.0
  %221 = vmatprep.subr.mxu0 0.0
  %222 = vmatpush1.msra.mxu0 0.0
  %223 = vmatprep.subr.mxu0 0.0
  %224 = vmatpush1.msra.mxu0 0.0
  %225 = vmatprep.subr.mxu0 0.0
  %226 = vmatpush1.msra.mxu0 0.0
  %227 = vmatprep.subr.mxu0 0.0
  %228 = vmatpush1.msra.mxu0 0.0
  %229 = vmatprep.subr.mxu0 0.0
  %230 = vmatpush1.msra.mxu0 0.0
  %231 = vmatprep.subr.mxu0 0.0
  %232 = vmatpush1.msra.mxu0 0.0
  %233 = vmatprep.subr.mxu0 0.0
  %234 = vmatpush1.msra.mxu0 0.0
  %235 = vmatprep.subr.mxu0 0.0
  %236 = vmatpush1.msra.mxu0 0.0
  %237 = vmatprep.subr.mxu0 0.0
  %238 = vmatpush1.msra.mxu0 0.0
  %239 = vmatprep.subr.mxu0 0.0
  %240 = vmatpush1.msra.mxu0 0.0
  %241 = vmatprep.subr.mxu0 0.0
  %242 = vmatpush1.msra.mxu0 0.0
  %243 = vmatprep.subr.mxu0 0.0
  %244 = vmatpush1.msra.mxu0 0.0
  %245 = vmatprep.subr.mxu0 0.0
  %246 = vmatpush1.msra.mxu0 0.0
  %247 = vmatprep.subr.mxu0 0.0
  %248 = vmatpush1.msra.mxu0 0.0
  %249 = vmatprep.mubr.f32.mxu0 0.0
  %250 = vmatmul.mubr.f32.gmra.mrb[0].mxu0 %v183
  %v251 = vpop.f32.mrb[0].mxu0
  %v252 = vadd.f32 %v181, %v251
  %v253 = vpop.f32.mrb[0].mxu0
  %254 = vdwg.mxu0
  %v255 = vmax.f32 %v252, 0.0
  %v256 = vld [vmem:[%s1 + $0x40] sm:$0xff]
  %v257 = vld [vmem:[%s1 + $0x48] sm:$0xff]
  %v258 = vld [vmem:[%s1 + $0x50] sm:$0x1]
  %v259 = vlaneseq
  %v260 = vshrl.u32 %v259, 7
  %v261 = vsub.s32 0, %v260
  %v262 = vrot.slane %v258, %v261
  %v264 = vsel %vm100, %v255, 0
  %266 = vmatprep.subr.mxu0 0.0
  %267 = vmatpush1.msra.mxu0 %v256
  %268 = vmatprep.subr.mxu0 0.0
  %269 = vmatpush1.msra.mxu0 %v257
  %270 = vmatprep.subr.mxu0 0.0
  %271 = vmatpush1.msra.mxu0 0.0
  %272 = vmatprep.subr.mxu0 0.0
  %273 = vmatpush1.msra.mxu0 0.0
  %274 = vmatprep.subr.mxu0 0.0
  %275 = vmatpush1.msra.mxu0 0.0
  %276 = vmatprep.subr.mxu0 0.0
  %277 = vmatpush1.msra.mxu0 0.0
  %278 = vmatprep.subr.mxu0 0.0
  %279 = vmatpush1.msra.mxu0 0.0
  %280 = vmatprep.subr.mxu0 0.0
  %281 = vmatpush1.msra.mxu0 0.0
  %282 = vmatprep.subr.mxu0 0.0
  %283 = vmatpush1.msra.mxu0 0.0
  %284 = vmatprep.subr.mxu0 0.0
  %285 = vmatpush1.msra.mxu0 0.0
  %286 = vmatprep.subr.mxu0 0.0
  %287 = vmatpush1.msra.mxu0 0.0
  %288 = vmatprep.subr.mxu0 0.0
  %289 = vmatpush1.msra.mxu0 0.0
  %290 = vmatprep.subr.mxu0 0.0
  %291 = vmatpush1.msra.mxu0 0.0
  %292 = vmatprep.subr.mxu0 0.0
  %293 = vmatpush1.msra.mxu0 0.0
  %294 = vmatprep.subr.mxu0 0.0
  %295 = vmatpush1.msra.mxu0 0.0
  %296 = vmatprep.subr.mxu0 0.0
  %297 = vmatpush1.msra.mxu0 0.0
  %298 = vmatprep.subr.mxu0 0.0
  %299 = vmatpush1.msra.mxu0 0.0
  %300 = vmatprep.subr.mxu0 0.0
  %301 = vmatpush1.msra.mxu0 0.0
  %302 = vmatprep.subr.mxu0 0.0
  %303 = vmatpush1.msra.mxu0 0.0
  %304 = vmatprep.subr.mxu0 0.0
  %305 = vmatpush1.msra.mxu0 0.0
  %306 = vmatprep.subr.mxu0 0.0
  %307 = vmatpush1.msra.mxu0 0.0
  %308 = vmatprep.subr.mxu0 0.0
  %309 = vmatpush1.msra.mxu0 0.0
  %310 = vmatprep.subr.mxu0 0.0
  %311 = vmatpush1.msra.mxu0 0.0
  %312 = vmatprep.subr.mxu0 0.0
  %313 = vmatpush1.msra.mxu0 0.0
  %314 = vmatprep.subr.mxu0 0.0
  %315 = vmatpush1.msra.mxu0 0.0
  %316 = vmatprep.subr.mxu0 0.0
  %317 = vmatpush1.msra.mxu0 0.0
  %318 = vmatprep.subr.mxu0 0.0
  %319 = vmatpush1.msra.mxu0 0.0
  %320 = vmatprep.subr.mxu0 0.0
  %321 = vmatpush1.msra.mxu0 0.0
  %322 = vmatprep.subr.mxu0 0.0
  %323 = vmatpush1.msra.mxu0 0.0
  %324 = vmatprep.subr.mxu0 0.0
  %325 = vmatpush1.msra.mxu0 0.0
  %326 = vmatprep.subr.mxu0 0.0
  %327 = vmatpush1.msra.mxu0 0.0
  %328 = vmatprep.subr.mxu0 0.0
  %329 = vmatpush1.msra.mxu0 0.0
  %330 = vmatprep.mubr.f32.mxu0 0.0
  %331 = vmatmul.mubr.f32.gmra.mrb[0].mxu0 %v264
  %v332 = vpop.f32.mrb[0].mxu0
  %v333 = vadd.f32 %v262, %v332
  %v334 = vpop.f32.mrb[0].mxu0
  %335 = vdwg.mxu0
  %vm336 = vcmask 31744
  %v337 = vsel %vm336, %v333, -inf
  %338 = vmax.xlane.f32.xlu0 %v337
  %v339 = vpop.xlane.xlu0 %338
  %v340 = vsub.f32 %v333, %v339
  %v341 = vmul.f32 %v340, 1.442695
  %v342 = vpow.pop %v341
  %v343 = vsel %vm336, %v342, 0.0
  %344 = vadd.xlane.f32.xlu0 %v343
  %v345 = vpop.xlane.xlu0 %344
  %v346 = vrcp.pop %v345
  %v347 = vmul.f32 %v342, %v346
  %348 = vst.msk [vmem:[%s2] sm:$0xff] %vm336, %v347
  // Predicated region
  $region10: #{tpu_custom_call.1} parent=0 // pred_check
    _
  $region11: #{tpu_custom_call.1} parent=0 // pred_check_branch
    %350 = sbr.rel (0) target = $region13
  $region12: #{tpu_custom_call.1} parent=0 // pred_region
    _
  $region13: #{tpu_custom_call.1} parent=0 // pred_fallthru
    _
  // Predicated region
  $region14: #{tpu_custom_call.1} parent=0 // pred_check
    _
  $region15: #{tpu_custom_call.1} parent=0 // pred_check_branch
    %352 = sbr.rel (0) target = $region17
  $region16: #{tpu_custom_call.1} parent=0 // pred_region
    _
  $region17: #{tpu_custom_call.1} parent=0 // pred_fallthru
    _

</llo_original>
